<compile_context>
chip_gen: v5e
topology: v5e:2x2
jax: 0.10.0
libtpu: 0.0.40
codegen_flags: <defaults>
</compile_context>

<pallas_src>
import jax
import jax.numpy as jnp
from jax import lax
from jax.experimental import pallas as pl
from jax.experimental.pallas import tpu as pltpu

_LANE = 128


def mlp_kernel(x_ref, w1_ref, b1_ref, w2t_ref, b2_ref, ot_ref):
    # Layer 1: Linear + Tanh.  MXU matmul with f32 accumulation; bias add and
    # tanh stay in f32 (safe on all generations, incl. v5e w/o bf16 VPU/EUP).
    h = jnp.tanh(
        jnp.dot(x_ref[...], w1_ref[...], preferred_element_type=jnp.float32)
        + b1_ref[...]
    )
    # Layer 2 computed transposed so the output store is lane-dense over the
    # batch axis:  (n_out, n_hidden) x (tile, n_hidden)^T -> (n_out, tile).
    w2t = w2t_ref[...]
    ot = lax.dot_general(
        w2t,
        h.astype(w2t.dtype),  # cast h only when feeding the MXU
        dimension_numbers=(((1,), (1,)), ((), ())),
        preferred_element_type=jnp.float32,
    ) + b2_ref[...]
    ot_ref[...] = ot.astype(ot_ref.dtype)


def mlp_forward(x, w1, b1, w2, b2, *, batch_tile=512, operand_dtype=None):
    """y = tanh(x @ w1 + b1) @ w2 + b2, as a single Pallas TPU kernel."""
    B, n_in = x.shape
    n_hidden = w1.shape[1]
    n_out = w2.shape[1]
    out_dtype = x.dtype

    # Optional bf16 matmul operands (v6e/v7x MXU-native; halves HBM traffic).
    if operand_dtype is not None:
        x = x.astype(operand_dtype)
        w1 = w1.astype(operand_dtype)
        w2 = w2.astype(operand_dtype)

    # Pad hidden width to a full 128-lane vreg: tanh / bias / 2nd matmul run
    # lane-dense.  Zero-padded W1 cols + b1 give tanh(0)=0 lanes -> no effect.
    n_hidden_p = max(_LANE, pl.cdiv(n_hidden, _LANE) * _LANE)
    if n_hidden_p != n_hidden:
        pad = n_hidden_p - n_hidden
        w1 = jnp.pad(w1, ((0, 0), (0, pad)))
        b1 = jnp.pad(b1, ((0, pad),))
        w2 = jnp.pad(w2, ((0, pad), (0, 0)))

    # Batch tiling: single step for small B, else big lane-aligned tiles with
    # ragged-batch padding (no divisibility requirement on the caller).
    if B <= batch_tile:
        tile = B
        B_p = B
    else:
        tile = batch_tile
        assert tile % _LANE == 0, "batch_tile must be a multiple of 128"
        B_p = pl.cdiv(B, tile) * tile
    if B_p != B:
        x = jnp.pad(x, ((0, B_p - B), (0, 0)))

    b1r = b1.reshape(1, n_hidden_p).astype(jnp.float32)
    w2t = jnp.transpose(w2)                      # (n_out, n_hidden_p)
    b2c = b2.reshape(n_out, 1).astype(jnp.float32)

    grid = (B_p // tile,)

    itemsize = jnp.dtype(x.dtype).itemsize
    flops = 2 * B_p * n_in * n_hidden_p + 2 * B_p * n_hidden_p * n_out
    bytes_accessed = (
        B_p * n_in * itemsize
        + w1.size * itemsize
        + w2t.size * itemsize
        + (b1r.size + b2c.size) * 4
        + B_p * n_out * jnp.dtype(out_dtype).itemsize
    )

    out_t = pl.pallas_call(
        mlp_kernel,
        out_shape=jax.ShapeDtypeStruct((n_out, B_p), out_dtype),
        grid=grid,
        in_specs=[
            pl.BlockSpec((tile, n_in), lambda i: (i, 0)),         # x tile
            pl.BlockSpec((n_in, n_hidden_p), lambda i: (0, 0)),   # W1 (resident)
            pl.BlockSpec((1, n_hidden_p), lambda i: (0, 0)),      # b1 (resident)
            pl.BlockSpec((n_out, n_hidden_p), lambda i: (0, 0)),  # W2^T (resident)
            pl.BlockSpec((n_out, 1), lambda i: (0, 0)),           # b2 (resident)
        ],
        out_specs=pl.BlockSpec((n_out, tile), lambda i: (0, i)),  # lane-dense
        compiler_params=pltpu.CompilerParams(
            dimension_semantics=("parallel",),
        ),
        cost_estimate=pl.CostEstimate(
            flops=flops,
            transcendentals=B_p * n_hidden_p,
            bytes_accessed=bytes_accessed,
        ),
    )(x, w1, b1r, w2t, b2c)

    # Back to (B, n_out) in the wrapper; strip batch padding.
    return jnp.transpose(out_t)[:B]


if __name__ == "__main__":
    # Small shapes consistent with the module defaults:
    # n_inputs=16, n_hidden_layers=1, n_units_per_layer=32, n_outputs=4
    batch, n_inputs, n_hidden, n_outputs = 16, 16, 32, 4

    key = jax.random.PRNGKey(0)
    kx, kw1, kb1, kw2, kb2 = jax.random.split(key, 5)

    x = jax.random.normal(kx, (batch, n_inputs), dtype=jnp.float32)
    # Linear params pre-transposed to (in, out); biases (out,).
    w1 = jax.random.normal(kw1, (n_inputs, n_hidden), dtype=jnp.float32) * 0.1
    b1 = jax.random.normal(kb1, (n_hidden,), dtype=jnp.float32) * 0.1
    w2 = jax.random.normal(kw2, (n_hidden, n_outputs), dtype=jnp.float32) * 0.1
    b2 = jax.random.normal(kb2, (n_outputs,), dtype=jnp.float32) * 0.1

    ref = jnp.tanh(x @ w1 + b1) @ w2 + b2

    # f32 path (strict tolerance).
    out = jax.block_until_ready(mlp_forward(x, w1, b1, w2, b2))
    assert out.shape == (batch, n_outputs)
    assert jnp.allclose(out, ref, atol=1e-5, rtol=1e-5)

    # bf16-operand path (halves HBM traffic on v6e/v7x; f32 accumulate/tanh).
    out_bf16 = jax.block_until_ready(
        mlp_forward(x, w1, b1, w2, b2, operand_dtype=jnp.bfloat16)
    )
    assert out_bf16.shape == (batch, n_outputs)
    assert jnp.allclose(out_bf16, ref, atol=5e-2, rtol=5e-2)

    # Ragged-batch path (B not a multiple of 8 — wrapper pads, then slices).
    x_rag = jax.random.normal(kx, (13, n_inputs), dtype=jnp.float32)
    ref_rag = jnp.tanh(x_rag @ w1 + b1) @ w2 + b2
    out_rag = jax.block_until_ready(mlp_forward(x_rag, w1, b1, w2, b2))
    assert out_rag.shape == (13, n_outputs)
    assert jnp.allclose(out_rag, ref_rag, atol=1e-5, rtol=1e-5)

    print("KERNEL_OK")
</pallas_src>

<mosaic_0001>
module attributes {stable_mosaic.version = 11 : i64} {
  func.func @mlp_kernel(%arg0: i32, %arg1: memref<16x16xf32, #tpu.memory_space<vmem>>, %arg2: memref<16x128xf32, #tpu.memory_space<vmem>>, %arg3: memref<1x128xf32, #tpu.memory_space<vmem>>, %arg4: memref<4x128xf32, #tpu.memory_space<vmem>>, %arg5: memref<4x1xf32, #tpu.memory_space<vmem>>, %arg6: memref<4x16xf32, #tpu.memory_space<vmem>>) attributes {dimension_semantics = [#tpu.dimension_semantics<parallel>], iteration_bounds = array<i64: 1>, scalar_prefetch = 0 : i64, scratch_operands = 0 : i64, tpu.core_type = #tpu.core_type<tc>, window_params = [{transform_indices = @transform_0, window_bounds = array<i64: 16, 16>}, {pipeline_mode = #tpu.pipeline_mode<synchronous>, transform_indices = @transform_1, window_bounds = array<i64: 16, 128>}, {pipeline_mode = #tpu.pipeline_mode<synchronous>, transform_indices = @transform_2, window_bounds = array<i64: 1, 128>}, {pipeline_mode = #tpu.pipeline_mode<synchronous>, transform_indices = @transform_3, window_bounds = array<i64: 4, 128>}, {pipeline_mode = #tpu.pipeline_mode<synchronous>, transform_indices = @transform_4, window_bounds = array<i64: 4, 1>}, {transform_indices = @transform_5, window_bounds = array<i64: 4, 16>}]} {
    %c0 = arith.constant 0 : index
    %c0_0 = arith.constant 0 : index
    %0 = vector.load %arg1[%c0, %c0_0] : memref<16x16xf32, #tpu.memory_space<vmem>>, vector<16x16xf32>
    %c0_1 = arith.constant 0 : index
    %c0_2 = arith.constant 0 : index
    %1 = vector.load %arg2[%c0_1, %c0_2] : memref<16x128xf32, #tpu.memory_space<vmem>>, vector<16x128xf32>
    %cst = arith.constant dense<0.000000e+00> : vector<16x128xf32>
    %2 = tpu.matmul %0, %1, %cst {dimension_numbers = #tpu.dot_dimension_numbers<[1], [0], [0], [1], [0, 0, 1, 1], [], []>} : vector<16x16xf32>, vector<16x128xf32>, vector<16x128xf32> -> vector<16x128xf32>
    %c0_3 = arith.constant 0 : index
    %c0_4 = arith.constant 0 : index
    %3 = vector.load %arg3[%c0_3, %c0_4] : memref<1x128xf32, #tpu.memory_space<vmem>>, vector<1x128xf32>
    %4 = vector.broadcast %3 : vector<1x128xf32> to vector<16x128xf32>
    %5 = arith.addf %2, %4 : vector<16x128xf32>
    %6 = math.tanh %5 : vector<16x128xf32>
    %c0_5 = arith.constant 0 : index
    %c0_6 = arith.constant 0 : index
    %7 = vector.load %arg4[%c0_5, %c0_6] : memref<4x128xf32, #tpu.memory_space<vmem>>, vector<4x128xf32>
    %cst_7 = arith.constant dense<0.000000e+00> : vector<4x16xf32>
    %8 = tpu.matmul %7, %6, %cst_7 {dimension_numbers = #tpu.dot_dimension_numbers<[1], [1], [0], [0], [0, 0, 1, 0], [], []>} : vector<4x128xf32>, vector<16x128xf32>, vector<4x16xf32> -> vector<4x16xf32>
    %c0_8 = arith.constant 0 : index
    %c0_9 = arith.constant 0 : index
    %9 = vector.load %arg5[%c0_8, %c0_9] : memref<4x1xf32, #tpu.memory_space<vmem>>, vector<4x1xf32>
    %10 = vector.broadcast %9 : vector<4x1xf32> to vector<4x16xf32>
    %11 = arith.addf %8, %10 : vector<4x16xf32>
    %c0_10 = arith.constant 0 : index
    %c0_11 = arith.constant 0 : index
    %12 = vector.load %arg6[%c0_10, %c0_11] : memref<4x16xf32, #tpu.memory_space<vmem>>, vector<4x16xf32>
    tpu.vector_store %arg6[%c0_10, %c0_11], %11 {strides = array<i32>} : memref<4x16xf32, #tpu.memory_space<vmem>>, vector<4x16xf32>,
    return
  }
  func.func @transform_0(%arg0: i32) -> (i32, i32) {
    %c0_i32 = arith.constant 0 : i32
    %c0_i32_0 = arith.constant 0 : i32
    return %arg0, %c0_i32 : i32, i32
  }
  func.func @transform_1(%arg0: i32) -> (i32, i32) {
    %c0_i32 = arith.constant 0 : i32
    %c0_i32_0 = arith.constant 0 : i32
    %c0_i32_1 = arith.constant 0 : i32
    return %c0_i32, %c0_i32_0 : i32, i32
  }
  func.func @transform_2(%arg0: i32) -> (i32, i32) {
    %c0_i32 = arith.constant 0 : i32
    %c0_i32_0 = arith.constant 0 : i32
    %c0_i32_1 = arith.constant 0 : i32
    return %c0_i32, %c0_i32_0 : i32, i32
  }
  func.func @transform_3(%arg0: i32) -> (i32, i32) {
    %c0_i32 = arith.constant 0 : i32
    %c0_i32_0 = arith.constant 0 : i32
    %c0_i32_1 = arith.constant 0 : i32
    return %c0_i32, %c0_i32_0 : i32, i32
  }
  func.func @transform_4(%arg0: i32) -> (i32, i32) {
    %c0_i32 = arith.constant 0 : i32
    %c0_i32_0 = arith.constant 0 : i32
    %c0_i32_1 = arith.constant 0 : i32
    return %c0_i32, %c0_i32_0 : i32, i32
  }
  func.func @transform_5(%arg0: i32) -> (i32, i32) {
    %c0_i32 = arith.constant 0 : i32
    %c0_i32_0 = arith.constant 0 : i32
    return %c0_i32, %arg0 : i32, i32
  }
}

</mosaic_0001>

<llo_original>
// kernel: tpu_custom_call.1
$region0: #{tpu_custom_call.1}
  #allocation0 [shape = 'u32[]', space=smem, size = 0x4, offset = 0x4, fixed_abs, tag = 'smem constant byte address 0x4 - core index']
  #allocation1 [shape = 'u32[72,128]{1,0:T(1,128)}', space=vmem, size = 0x9000, scoped, tag = 'internal scratch']
  %s0 = inlined_call_operand.hbm [shape: f32[16,16], index: 0, kind: input, shape index: {}]
  %s1 = inlined_call_operand.hbm [shape: f32[16,128], index: 1, kind: input, shape index: {}]
  %s2 = inlined_call_operand.vmem [shape: f32[1,128], index: 2, kind: input, shape index: {}]
  %s3 = inlined_call_operand.vmem [shape: f32[4,128], index: 3, kind: input, shape index: {}]
  %s4 = inlined_call_operand.vmem [shape: f32[4,1], index: 4, kind: input, shape index: {}]
  %s5 = inlined_call_operand.hbm [shape: f32[4,16], index: 5, kind: output, shape index: {}]
  %s6 = sld [smem:[#allocation0]]
  $region38: #{tpu_custom_call.1} parent=0
    _
  %s8 = ssub.s32 1, %s6
  %s9 = scalar_select 0, %s8, %s6
  $region1: #{tpu_custom_call.1} parent=0
    #allocation2 [shape = 'u8[8192]{0}', space=vmem, size = 0x2000, scoped, tag = 'input window, operand 0, single buffered']
    #allocation3 [shape = 's32[1]{0}', space=sflag, size = 0x4, scoped, tag = 'scoped memory for tpu_custom_call.1']
    #allocation4 [shape = 's32[1]{0}', space=sflag, size = 0x4, scoped, tag = 'scoped memory for tpu_custom_call.1']
    #allocation5 [shape = 'u8[8192]{0}', space=vmem, size = 0x2000, scoped, tag = 'input window, operand 1, single buffered']
    #allocation6 [shape = 's32[1]{0}', space=sflag, size = 0x4, scoped, tag = 'scoped memory for tpu_custom_call.1']
    #allocation7 [shape = 'u8[2048]{0}', space=vmem, size = 0x800, scoped, tag = 'output window, operand 0, single buffered']
    %10 = vsyncpa [#allocation3], 0
    %11 = vsyncpa [#allocation6], 0
    %12 = vsyncpa [#allocation4], 0
    // Predicated region
    $region2: #{tpu_custom_call.1} parent=1 // pred_check
      _
    $region3: #{tpu_custom_call.1} parent=1 // pred_check_branch
      %14 = sbr.rel (0) target = $region5
    $region4: #{tpu_custom_call.1} parent=1 // pred_region
      %16 = vsyncadd [#allocation3], 0
      %s17 = sshll.u32 %s0, 4
      %s18 = int_to_ptr.hbm [resolvable:$true] %s17
      %s19 = sshll.u32 [#allocation2], 4
      %s20 = int_to_ptr.vmem [resolvable:$true] %s19
      %25 = dma.hbm_to_vmem [thread:$0]  %s18, 256, %s20, [#allocation3], 128, 128, 8
    $region5: #{tpu_custom_call.1} parent=1 // pred_fallthru
      _
    // Predicated region
    $region6: #{tpu_custom_call.1} parent=1 // pred_check
      _
    $region7: #{tpu_custom_call.1} parent=1 // pred_check_branch
      %27 = sbr.rel (0) target = $region9
    $region8: #{tpu_custom_call.1} parent=1 // pred_region
      %29 = vsyncadd [#allocation6], 0
      %s30 = sshll.u32 %s1, 4
      %s31 = int_to_ptr.hbm [resolvable:$true] %s30
      %s32 = sshll.u32 [#allocation5], 4
      %s33 = int_to_ptr.vmem [resolvable:$true] %s32
      %38 = dma.hbm_to_vmem [thread:$0]  %s31, 256, %s33, [#allocation6], 128, 128, 8
    $region9: #{tpu_custom_call.1} parent=1 // pred_fallthru
      _
    // Predicated region
    $region10: #{tpu_custom_call.1} parent=1 // pred_check
      _
    $region11: #{tpu_custom_call.1} parent=1 // pred_check_branch
      %40 = sbr.rel (0) target = $region13
    $region12: #{tpu_custom_call.1} parent=1 // pred_region
      _
    $region13: #{tpu_custom_call.1} parent=1 // pred_fallthru
      _
    // Predicated region
    $region14: #{tpu_custom_call.1} parent=1 // pred_check
      _
    $region15: #{tpu_custom_call.1} parent=1 // pred_check_branch
      %42 = sbr.rel (0) target = $region17
    $region16: #{tpu_custom_call.1} parent=1 // pred_region
      _
    $region17: #{tpu_custom_call.1} parent=1 // pred_fallthru
      _
    // Predicated region
    $region18: #{tpu_custom_call.1} parent=1 // pred_check
      _
    $region19: #{tpu_custom_call.1} parent=1 // pred_check_branch
      %44 = sbr.rel (0) target = $region21
    $region20: #{tpu_custom_call.1} parent=1 // pred_region
      _
    $region21: #{tpu_custom_call.1} parent=1 // pred_fallthru
      _
    // Predicated region
    $region22: #{tpu_custom_call.1} parent=1 // pred_check
      _
    $region23: #{tpu_custom_call.1} parent=1 // pred_check_branch
      %46 = sbr.rel (0) target = $region25
    $region24: #{tpu_custom_call.1} parent=1 // pred_region
      %48 = dma.done [#allocation3], 256
    $region25: #{tpu_custom_call.1} parent=1 // pred_fallthru
      _
    // Predicated region
    $region26: #{tpu_custom_call.1} parent=1 // pred_check
      _
    $region27: #{tpu_custom_call.1} parent=1 // pred_check_branch
      %50 = sbr.rel (0) target = $region29
    $region28: #{tpu_custom_call.1} parent=1 // pred_region
      %52 = dma.done [#allocation6], 256
    $region29: #{tpu_custom_call.1} parent=1 // pred_fallthru
      _
    %v53 = vld [vmem:[#allocation2] sm:$0xff]
    %v54 = vld [vmem:[#allocation2 + $0x8] sm:$0xff]
    %v55 = vld [vmem:[#allocation5] sm:$0xff]
    %v56 = vld [vmem:[#allocation5 + $0x8] sm:$0xff]
    %v57 = vld [vmem:[%s2] sm:$0x1]
    %v59 = vperm.slane %v57, 0
    %vm61 = vcmask 130048
    %v63 = vsel %vm61, %v53, 0
    %v66 = vsel %vm61, %v54, 0
    %68 = vmatpush.msra.mxu0 0.0
    %69 = vmatpush.msra.mxu0 0.0
    %70 = vmatpush.msra.mxu0 0.0
    %71 = vmatpush.msra.mxu0 0.0
    %72 = vmatpush.msra.mxu0 0.0
    %73 = vmatpush.msra.mxu0 0.0
    %74 = vmatpush.msra.mxu0 0.0
    %75 = vmatpush.msra.mxu0 0.0
    %76 = vmatpush.msra.mxu0 0.0
    %77 = vmatpush.msra.mxu0 0.0
    %78 = vmatpush.msra.mxu0 0.0
    %79 = vmatpush.msra.mxu0 0.0
    %80 = vmatpush.msra.mxu0 0.0
    %81 = vmatpush.msra.mxu0 0.0
    %82 = vmatpush.msra.mxu0 %v56
    %83 = vmatpush.msra.mxu0 %v55
    %84 = vmatmul.f32.gmra.mxu0 %v63
    %v85 = vpop.f32.mrf.mxu0
    %v86 = vadd.f32 %v59, %v85
    %87 = vmatmul.f32.gmra.mxu0 %v66
    %v88 = vpop.f32.mrf.mxu0
    %v89 = vadd.f32 %v59, %v88
    %90 = vdwg.mxu0
    %v91 = vtanh.pop %v86
    %v92 = vtanh.pop %v89
    %v93 = vld [vmem:[%s3] sm:$0xf]
    %v94 = vld [vmem:[%s4] sm:$0xf]
    %96 = vset.pattern.permute.xlu0 0
    %97 = vperm.xlu0 %96, %v94
    %v98 = vpop.permute.xlu0 %97
    %100 = vmatpush.xpose.msra.mxu0 0.0
    %101 = vmatpush.xpose.msra.mxu0 0.0
    %102 = vmatpush.xpose.msra.mxu0 0.0
    %103 = vmatpush.xpose.msra.mxu0 0.0
    %104 = vmatpush.xpose.msra.mxu0 0.0
    %105 = vmatpush.xpose.msra.mxu0 0.0
    %106 = vmatpush.xpose.msra.mxu0 0.0
    %107 = vmatpush.xpose.msra.mxu0 0.0
    %108 = vmatpush.xpose.msra.mxu0 0.0
    %109 = vmatpush.xpose.msra.mxu0 0.0
    %110 = vmatpush.xpose.msra.mxu0 0.0
    %111 = vmatpush.xpose.msra.mxu0 0.0
    %112 = vmatpush.xpose.msra.mxu0 0.0
    %113 = vmatpush.xpose.msra.mxu0 0.0
    %114 = vmatpush.xpose.msra.mxu0 %v92
    %115 = vmatpush.xpose.msra.mxu0 %v91
    %116 = vmatmul.f32.gmra.mxu0 %v93
    %v117 = vpop.f32.mrf.mxu0
    %v118 = vadd.f32 %v98, %v117
    %119 = vdwg.mxu0
    %vm120 = vcmask 125952
    %121 = vst.msk [vmem:[#allocation7] sm:$0xf] %vm120, %v118
    // Predicated region
    $region30: #{tpu_custom_call.1} parent=1 // pred_check
      _
    $region31: #{tpu_custom_call.1} parent=1 // pred_check_branch
      %123 = sbr.rel (0) target = $region33
    $region32: #{tpu_custom_call.1} parent=1 // pred_region
      %125 = vsyncadd [#allocation4], 0
      %s127 = sshll.u32 [#allocation7], 4
      %s128 = int_to_ptr.vmem [resolvable:$true] %s127
      %s129 = sshll.u32 %s5, 4
      %s130 = int_to_ptr.hbm [resolvable:$true] %s129
      %132 = dma.vmem_to_hbm [thread:$0]  %s128, 64, %s130, [#allocation4]
    $region33: #{tpu_custom_call.1} parent=1 // pred_fallthru
      _
    // Predicated region
    $region34: #{tpu_custom_call.1} parent=1 // pred_check
      _
    $region35: #{tpu_custom_call.1} parent=1 // pred_check_branch
      %134 = sbr.rel (0) target = $region37
    $region36: #{tpu_custom_call.1} parent=1 // pred_region
      %136 = dma.done [#allocation4], 64
    $region37: #{tpu_custom_call.1} parent=1 // pred_fallthru
      _
    %137 = vsyncpa [#allocation3], 1
    %138 = vsyncpa [#allocation6], 1
    %139 = vsyncpa [#allocation4], 1

</llo_original>
